<compile_context>
chip_gen: v6e
topology: v6e:2x2x1
jax: 0.10.0
libtpu: 0.0.40
codegen_flags: <defaults>
</compile_context>

<pallas_src>
import jax
import jax.numpy as jnp
from jax import lax
from jax.experimental import pallas as pl
from jax.experimental.pallas import tpu as pltpu

HIDDEN_SIZE = 32
DEFAULT_TILE_ROWS = 2048          # packed rows per grid step (each packed row = `pack` batch rows)
COMPUTE_CHUNK_ROWS = 256          # packed rows per inner compute chunk (caps h1/h2 scratch)
TILE_PAYLOAD_BYTES = 4 * 1024 * 1024   # target in+out payload per grid step
VMEM_LIMIT_BYTES = 32 * 1024 * 1024    # explicit scoped-VMEM limit (safe on v5e/v6e/v7x)


def _round_up(x, m):
    return ((x + m - 1) // m) * m


def _make_kernel(chunk_rows, num_chunks):
    """Kernel over one (tb_rows, 128) packed-input tile; compute chunked."""

    def kernel(x_ref, w1_ref, b1_ref, w2_ref, b2_ref, w3_ref, b3_ref, out_ref):
        w1 = w1_ref[...]
        b1 = b1_ref[...]
        w2 = w2_ref[...]
        b2 = b2_ref[...]
        w3 = w3_ref[...]
        b3 = b3_ref[...]

        def compute(row0):
            xb = x_ref[pl.ds(row0, chunk_rows), :]
            h1 = jnp.dot(xb, w1, preferred_element_type=jnp.float32) + b1
            h1 = jnp.maximum(h1, 0.0).astype(w2.dtype)
            h2 = jnp.dot(h1, w2, preferred_element_type=jnp.float32) + b2
            h2 = jnp.maximum(h2, 0.0).astype(w3.dtype)
            y = jnp.dot(h2, w3, preferred_element_type=jnp.float32) + b3
            out_ref[pl.ds(row0, chunk_rows), :] = y.astype(out_ref.dtype)

        if num_chunks == 1:
            compute(0)
        else:
            def body(c, carry):
                compute(pl.multiple_of(c * chunk_rows, chunk_rows))
                return carry
            lax.fori_loop(0, num_chunks, body, 0, unroll=num_chunks <= 8)

    return kernel


def model_forward(observation, action, params, *,
                  tile_rows=DEFAULT_TILE_ROWS,
                  storage_dtype=jnp.float32):
    """observation: (B, obs_dim), action: (B, action_dim) -> (B, obs_dim)."""
    w1, b1, w2, b2, w3, b3 = params
    batch, obs_dim = observation.shape
    act_dim = action.shape[1]
    hidden = w1.shape[1]
    out_dim = w3.shape[1]
    feat = obs_dim + act_dim

    # ---- lane-packing geometry ---------------------------------------------
    feat_pad = max(8, pl.next_power_of_2(feat))
    if feat_pad <= 128:
        pack = 128 // feat_pad              # batch rows packed per 128-lane row
    else:
        feat_pad = _round_up(feat, 128)
        pack = 1
    out_pad = _round_up(out_dim, 128 // pack)   # keeps packed output width a multiple of 128
    in_width = pack * feat_pad
    out_width = pack * out_pad
    hidden_w = pack * hidden

    # ---- block-diagonal weight expansion (tiny, once per call) --------------
    w1p = jnp.zeros((feat_pad, hidden), jnp.float32).at[:feat, :].set(w1.astype(jnp.float32))
    w3p = jnp.zeros((hidden, out_pad), jnp.float32).at[:, :out_dim].set(w3.astype(jnp.float32))
    b3p = jnp.zeros((1, out_pad), jnp.float32).at[:, :out_dim].set(b3.astype(jnp.float32))
    eye = jnp.eye(pack, dtype=jnp.float32)
    w1_bd = jnp.kron(eye, w1p).astype(storage_dtype)                    # (in_width, hidden_w)
    w2_bd = jnp.kron(eye, w2.astype(jnp.float32)).astype(storage_dtype)  # (hidden_w, hidden_w)
    w3_bd = jnp.kron(eye, w3p).astype(storage_dtype)                    # (hidden_w, out_width)
    b1_bd = jnp.tile(b1.astype(jnp.float32), (1, pack))                 # (1, hidden_w) f32
    b2_bd = jnp.tile(b2.astype(jnp.float32), (1, pack))                 # (1, hidden_w) f32
    b3_bd = jnp.tile(b3p, (1, pack))                                    # (1, out_width) f32

    # ---- batch packing & tiling ---------------------------------------------
    rows_needed = pl.cdiv(batch, pack)
    itemsize = jnp.dtype(storage_dtype).itemsize
    bytes_per_row = (in_width + out_width) * itemsize
    tb_cap = max(8, (TILE_PAYLOAD_BYTES // max(bytes_per_row, 1)) // 8 * 8)
    tb_rows = min(max(8, _round_up(tile_rows, 8)), tb_cap, _round_up(rows_needed, 8))
    rows_padded = _round_up(rows_needed, tb_rows)   # full tiles only
    num_tiles = rows_padded // tb_rows
    batch_padded = rows_padded * pack

    # Single wrapper pass: concat + feature pad + ragged-batch pad + lane pack.
    x_flat = jnp.zeros((batch_padded, feat_pad), storage_dtype)
    x_flat = x_flat.at[:batch, :obs_dim].set(observation.astype(storage_dtype))
    x_flat = x_flat.at[:batch, obs_dim:feat].set(action.astype(storage_dtype))
    x_packed = x_flat.reshape(rows_padded, in_width)   # free, contiguous

    chunk = COMPUTE_CHUNK_ROWS if tb_rows % COMPUTE_CHUNK_ROWS == 0 else tb_rows
    num_chunks = tb_rows // chunk
    kernel = _make_kernel(chunk, num_chunks)

    def row_spec(width):
        return pl.BlockSpec((tb_rows, width), lambda i: (i, 0))

    def const_spec(arr):
        # Whole (small) parameter, same block every step -> stays VMEM-resident.
        return pl.BlockSpec(arr.shape, lambda i: (0, 0))

    out_packed = pl.pallas_call(
        kernel,
        out_shape=jax.ShapeDtypeStruct((rows_padded, out_width), storage_dtype),
        grid=(num_tiles,),
        in_specs=[
            row_spec(in_width),
            const_spec(w1_bd), const_spec(b1_bd),
            const_spec(w2_bd), const_spec(b2_bd),
            const_spec(w3_bd), const_spec(b3_bd),
        ],
        out_specs=row_spec(out_width),
        compiler_params=pltpu.CompilerParams(
            dimension_semantics=("parallel",),
            vmem_limit_bytes=VMEM_LIMIT_BYTES,
        ),
    )(x_packed, w1_bd, b1_bd, w2_bd, b2_bd, w3_bd, b3_bd)

    y = out_packed.reshape(batch_padded, out_pad)[:batch, :out_dim]
    return y


def init_model_params(key, obs_dim, action_dim, hidden=HIDDEN_SIZE):
    """Deterministic init mimicking PyTorch nn.Linear default U(-1/sqrt(fan_in), 1/sqrt(fan_in))."""
    dims = [(obs_dim + action_dim, hidden), (hidden, hidden), (hidden, obs_dim)]
    params = []
    for fan_in, fan_out in dims:
        key, kw, kb = jax.random.split(key, 3)
        bound = 1.0 / jnp.sqrt(jnp.float32(fan_in))
        w = jax.random.uniform(kw, (fan_in, fan_out), jnp.float32, -bound, bound)
        b = jax.random.uniform(kb, (1, fan_out), jnp.float32, -bound, bound)
        params += [w, b]
    return tuple(params)


def reference_forward(observation, action, params):
    w1, b1, w2, b2, w3, b3 = params
    x = jnp.concatenate([observation, action], axis=-1)
    h = jnp.maximum(x @ w1 + b1, 0.0)
    h = jnp.maximum(h @ w2 + b2, 0.0)
    return h @ w3 + b3


if __name__ == "__main__":
    key = jax.random.PRNGKey(0)
    batch, obs_dim, action_dim = 2, 8, 4

    k_params, k_obs, k_act = jax.random.split(key, 3)
    params = init_model_params(k_params, obs_dim, action_dim)
    observation = jax.random.normal(k_obs, (batch, obs_dim), jnp.float32)
    action = jax.random.normal(k_act, (batch, action_dim), jnp.float32)

    y = jax.block_until_ready(model_forward(observation, action, params))
    assert y.shape == (batch, obs_dim), y.shape
    ref = reference_forward(observation, action, params)
    assert jnp.allclose(y, ref, atol=1e-5), float(jnp.max(jnp.abs(y - ref)))

    # Ragged batch spanning multiple grid steps (exercises packing + multi-tile grid).
    k_obs2, k_act2 = jax.random.split(jax.random.PRNGKey(1))
    batch2 = 300
    obs2 = jax.random.normal(k_obs2, (batch2, obs_dim), jnp.float32)
    act2 = jax.random.normal(k_act2, (batch2, action_dim), jnp.float32)
    y2 = jax.block_until_ready(model_forward(obs2, act2, params, tile_rows=16))
    ref2 = reference_forward(obs2, act2, params)
    assert y2.shape == (batch2, obs_dim), y2.shape
    assert jnp.allclose(y2, ref2, atol=1e-5), float(jnp.max(jnp.abs(y2 - ref2)))

    # bf16 storage path (v6e/v7x HBM-traffic optimization) - looser tolerance.
    y3 = jax.block_until_ready(
        model_forward(obs2, act2, params, storage_dtype=jnp.bfloat16))
    assert y3.shape == (batch2, obs_dim), y3.shape
    assert jnp.allclose(y3.astype(jnp.float32), ref2, atol=1e-1, rtol=1e-1)

    print("KERNEL_OK")
</pallas_src>

<mosaic_0001>
module attributes {stable_mosaic.version = 11 : i64} {
  func.func @kernel(%arg0: i32, %arg1: memref<8x128xf32, #tpu.memory_space<vmem>>, %arg2: memref<128x256xf32, #tpu.memory_space<vmem>>, %arg3: memref<1x256xf32, #tpu.memory_space<vmem>>, %arg4: memref<256x256xf32, #tpu.memory_space<vmem>>, %arg5: memref<1x256xf32, #tpu.memory_space<vmem>>, %arg6: memref<256x128xf32, #tpu.memory_space<vmem>>, %arg7: memref<1x128xf32, #tpu.memory_space<vmem>>, %arg8: memref<8x128xf32, #tpu.memory_space<vmem>>) attributes {dimension_semantics = [#tpu.dimension_semantics<parallel>], iteration_bounds = array<i64: 1>, scalar_prefetch = 0 : i64, scratch_operands = 0 : i64, tpu.core_type = #tpu.core_type<tc>, window_params = [{transform_indices = @transform_0, window_bounds = array<i64: 8, 128>}, {pipeline_mode = #tpu.pipeline_mode<synchronous>, transform_indices = @transform_1, window_bounds = array<i64: 128, 256>}, {pipeline_mode = #tpu.pipeline_mode<synchronous>, transform_indices = @transform_2, window_bounds = array<i64: 1, 256>}, {pipeline_mode = #tpu.pipeline_mode<synchronous>, transform_indices = @transform_3, window_bounds = array<i64: 256, 256>}, {pipeline_mode = #tpu.pipeline_mode<synchronous>, transform_indices = @transform_4, window_bounds = array<i64: 1, 256>}, {pipeline_mode = #tpu.pipeline_mode<synchronous>, transform_indices = @transform_5, window_bounds = array<i64: 256, 128>}, {pipeline_mode = #tpu.pipeline_mode<synchronous>, transform_indices = @transform_6, window_bounds = array<i64: 1, 128>}, {transform_indices = @transform_7, window_bounds = array<i64: 8, 128>}]} {
    %c0 = arith.constant 0 : index
    %c0_0 = arith.constant 0 : index
    %0 = vector.load %arg2[%c0, %c0_0] : memref<128x256xf32, #tpu.memory_space<vmem>>, vector<128x256xf32>
    %c0_1 = arith.constant 0 : index
    %c0_2 = arith.constant 0 : index
    %1 = vector.load %arg3[%c0_1, %c0_2] : memref<1x256xf32, #tpu.memory_space<vmem>>, vector<1x256xf32>
    %c0_3 = arith.constant 0 : index
    %c0_4 = arith.constant 0 : index
    %2 = vector.load %arg4[%c0_3, %c0_4] : memref<256x256xf32, #tpu.memory_space<vmem>>, vector<256x256xf32>
    %c0_5 = arith.constant 0 : index
    %c0_6 = arith.constant 0 : index
    %3 = vector.load %arg5[%c0_5, %c0_6] : memref<1x256xf32, #tpu.memory_space<vmem>>, vector<1x256xf32>
    %c0_7 = arith.constant 0 : index
    %c0_8 = arith.constant 0 : index
    %4 = vector.load %arg6[%c0_7, %c0_8] : memref<256x128xf32, #tpu.memory_space<vmem>>, vector<256x128xf32>
    %c0_9 = arith.constant 0 : index
    %c0_10 = arith.constant 0 : index
    %5 = vector.load %arg7[%c0_9, %c0_10] : memref<1x128xf32, #tpu.memory_space<vmem>>, vector<1x128xf32>
    %c0_11 = arith.constant 0 : index
    %c0_12 = arith.constant 0 : index
    %6 = vector.load %arg1[%c0_11, %c0_12] : memref<8x128xf32, #tpu.memory_space<vmem>>, vector<8x128xf32>
    %cst = arith.constant dense<0.000000e+00> : vector<8x256xf32>
    %7 = tpu.matmul %6, %0, %cst {dimension_numbers = #tpu.dot_dimension_numbers<[1], [0], [0], [1], [0, 0, 1, 1], [], []>} : vector<8x128xf32>, vector<128x256xf32>, vector<8x256xf32> -> vector<8x256xf32>
    %8 = vector.broadcast %1 : vector<1x256xf32> to vector<8x256xf32>
    %9 = arith.addf %7, %8 : vector<8x256xf32>
    %cst_13 = arith.constant 0.000000e+00 : f32
    %10 = vector.broadcast %cst_13 : f32 to vector<8x256xf32>
    %11 = arith.maximumf %9, %10 : vector<8x256xf32>
    %cst_14 = arith.constant dense<0.000000e+00> : vector<8x256xf32>
    %12 = tpu.matmul %11, %2, %cst_14 {dimension_numbers = #tpu.dot_dimension_numbers<[1], [0], [0], [1], [0, 0, 1, 1], [], []>} : vector<8x256xf32>, vector<256x256xf32>, vector<8x256xf32> -> vector<8x256xf32>
    %13 = vector.broadcast %3 : vector<1x256xf32> to vector<8x256xf32>
    %14 = arith.addf %12, %13 : vector<8x256xf32>
    %cst_15 = arith.constant 0.000000e+00 : f32
    %15 = vector.broadcast %cst_15 : f32 to vector<8x256xf32>
    %16 = arith.maximumf %14, %15 : vector<8x256xf32>
    %cst_16 = arith.constant dense<0.000000e+00> : vector<8x128xf32>
    %17 = tpu.matmul %16, %4, %cst_16 {dimension_numbers = #tpu.dot_dimension_numbers<[1], [0], [0], [1], [0, 0, 1, 1], [], []>} : vector<8x256xf32>, vector<256x128xf32>, vector<8x128xf32> -> vector<8x128xf32>
    %18 = vector.broadcast %5 : vector<1x128xf32> to vector<8x128xf32>
    %19 = arith.addf %17, %18 : vector<8x128xf32>
    %c0_17 = arith.constant 0 : index
    %c0_18 = arith.constant 0 : index
    %20 = vector.load %arg8[%c0_17, %c0_18] : memref<8x128xf32, #tpu.memory_space<vmem>>, vector<8x128xf32>
    tpu.vector_store %arg8[%c0_17, %c0_18], %19 {strides = array<i32>} : memref<8x128xf32, #tpu.memory_space<vmem>>, vector<8x128xf32>,
    return
  }
  func.func @transform_0(%arg0: i32) -> (i32, i32) {
    %c0_i32 = arith.constant 0 : i32
    %c0_i32_0 = arith.constant 0 : i32
    return %arg0, %c0_i32 : i32, i32
  }
  func.func @transform_1(%arg0: i32) -> (i32, i32) {
    %c0_i32 = arith.constant 0 : i32
    %c0_i32_0 = arith.constant 0 : i32
    %c0_i32_1 = arith.constant 0 : i32
    return %c0_i32, %c0_i32_0 : i32, i32
  }
  func.func @transform_2(%arg0: i32) -> (i32, i32) {
    %c0_i32 = arith.constant 0 : i32
    %c0_i32_0 = arith.constant 0 : i32
    %c0_i32_1 = arith.constant 0 : i32
    return %c0_i32, %c0_i32_0 : i32, i32
  }
  func.func @transform_3(%arg0: i32) -> (i32, i32) {
    %c0_i32 = arith.constant 0 : i32
    %c0_i32_0 = arith.constant 0 : i32
    %c0_i32_1 = arith.constant 0 : i32
    return %c0_i32, %c0_i32_0 : i32, i32
  }
  func.func @transform_4(%arg0: i32) -> (i32, i32) {
    %c0_i32 = arith.constant 0 : i32
    %c0_i32_0 = arith.constant 0 : i32
    %c0_i32_1 = arith.constant 0 : i32
    return %c0_i32, %c0_i32_0 : i32, i32
  }
  func.func @transform_5(%arg0: i32) -> (i32, i32) {
    %c0_i32 = arith.constant 0 : i32
    %c0_i32_0 = arith.constant 0 : i32
    %c0_i32_1 = arith.constant 0 : i32
    return %c0_i32, %c0_i32_0 : i32, i32
  }
  func.func @transform_6(%arg0: i32) -> (i32, i32) {
    %c0_i32 = arith.constant 0 : i32
    %c0_i32_0 = arith.constant 0 : i32
    %c0_i32_1 = arith.constant 0 : i32
    return %c0_i32, %c0_i32_0 : i32, i32
  }
  func.func @transform_7(%arg0: i32) -> (i32, i32) {
    %c0_i32 = arith.constant 0 : i32
    %c0_i32_0 = arith.constant 0 : i32
    return %arg0, %c0_i32 : i32, i32
  }
}

</mosaic_0001>

<llo_original>
// kernel: tpu_custom_call.1
$region0: #{tpu_custom_call.1}
  #allocation0 [shape = 'u32[]', space=smem, size = 0x4, offset = 0x4, fixed_abs, tag = 'smem constant byte address 0x4 - core index']
  #allocation1 [shape = 'u32[144,128]{1,0:T(1,128)}', space=vmem, size = 0x12000, scoped, tag = 'internal scratch']
  %s0 = inlined_call_operand.hbm [shape: f32[8,128], index: 0, kind: input, shape index: {}]
  %s1 = inlined_call_operand.hbm [shape: f32[128,256], index: 1, kind: input, shape index: {}]
  %s2 = inlined_call_operand.vmem [shape: f32[1,256], index: 2, kind: input, shape index: {}]
  %s3 = inlined_call_operand.hbm [shape: f32[256,256], index: 3, kind: input, shape index: {}]
  %s4 = inlined_call_operand.vmem [shape: f32[1,256], index: 4, kind: input, shape index: {}]
  %s5 = inlined_call_operand.hbm [shape: f32[256,128], index: 5, kind: input, shape index: {}]
  %s6 = inlined_call_operand.vmem [shape: f32[1,128], index: 6, kind: input, shape index: {}]
  %s7 = inlined_call_operand.hbm [shape: f32[8,128], index: 7, kind: output, shape index: {}]
  %s8 = sld [smem:[#allocation0]]
  $region54: #{tpu_custom_call.1} parent=0
    _
  %s10 = ssub.s32 1, %s8
  %s11 = scalar_select 0, %s10, %s8
  $region1: #{tpu_custom_call.1} parent=0
    #allocation2 [shape = 'u8[4096]{0}', space=vmem, size = 0x1000, scoped, tag = 'input window, operand 0, single buffered']
    #allocation3 [shape = 's32[1]{0}', space=sflag, size = 0x4, scoped, tag = 'scoped memory for tpu_custom_call.1']
    #allocation4 [shape = 's32[1]{0}', space=sflag, size = 0x4, scoped, tag = 'scoped memory for tpu_custom_call.1']
    #allocation5 [shape = 'u8[131072]{0}', space=vmem, size = 0x20000, scoped, tag = 'input window, operand 1, single buffered']
    #allocation6 [shape = 's32[1]{0}', space=sflag, size = 0x4, scoped, tag = 'scoped memory for tpu_custom_call.1']
    #allocation7 [shape = 'u8[262144]{0}', space=vmem, size = 0x40000, scoped, tag = 'input window, operand 3, single buffered']
    #allocation8 [shape = 'u8[131072]{0}', space=vmem, size = 0x20000, scoped, tag = 'input window, operand 5, single buffered']
    #allocation9 [shape = 's32[1]{0}', space=sflag, size = 0x4, scoped, tag = 'scoped memory for tpu_custom_call.1']
    #allocation10 [shape = 'u8[4096]{0}', space=vmem, size = 0x1000, scoped, tag = 'output window, operand 0, single buffered']
    %12 = vsyncpa [#allocation3], 0
    %13 = vsyncpa [#allocation6], 0
    %14 = vsyncpa [#allocation9], 0
    %15 = vsyncpa [#allocation4], 0
    // Predicated region
    $region2: #{tpu_custom_call.1} parent=1 // pred_check
      _
    $region3: #{tpu_custom_call.1} parent=1 // pred_check_branch
      %17 = sbr.rel (0) target = $region5
    $region4: #{tpu_custom_call.1} parent=1 // pred_region
      %s19 = ssub.s32 128, 128
      %20 = vsyncadd [#allocation3], %s19
      %s22 = sshll.u32 [#allocation2], 4
      %s23 = int_to_ptr.vmem [resolvable:$true] %s22
      %25 = dma.hbm_to_vmem [thread:$0]  %s0, 128, %s23, [#allocation3]
    $region5: #{tpu_custom_call.1} parent=1 // pred_fallthru
      _
    // Predicated region
    $region6: #{tpu_custom_call.1} parent=1 // pred_check
      _
    $region7: #{tpu_custom_call.1} parent=1 // pred_check_branch
      %27 = sbr.rel (0) target = $region9
    $region8: #{tpu_custom_call.1} parent=1 // pred_region
      %s29 = ssub.s32 4096, 4096
      %30 = vsyncadd [#allocation6], %s29
      %s31 = sshll.u32 [#allocation5], 4
      %s32 = int_to_ptr.vmem [resolvable:$true] %s31
      %37 = dma.hbm_to_vmem [thread:$0]  %s1, 4096, %s32, [#allocation6], 256, 256, 16
    $region9: #{tpu_custom_call.1} parent=1 // pred_fallthru
      _
    // Predicated region
    $region10: #{tpu_custom_call.1} parent=1 // pred_check
      _
    $region11: #{tpu_custom_call.1} parent=1 // pred_check_branch
      %39 = sbr.rel (0) target = $region13
    $region12: #{tpu_custom_call.1} parent=1 // pred_region
      _
    $region13: #{tpu_custom_call.1} parent=1 // pred_fallthru
      _
    // Predicated region
    $region14: #{tpu_custom_call.1} parent=1 // pred_check
      _
    $region15: #{tpu_custom_call.1} parent=1 // pred_check_branch
      %41 = sbr.rel (0) target = $region17
    $region16: #{tpu_custom_call.1} parent=1 // pred_region
      %s43 = ssub.s32 8192, 8192
      %44 = vsyncadd [#allocation6], %s43
      %s45 = sshll.u32 [#allocation7], 4
      %s46 = int_to_ptr.vmem [resolvable:$true] %s45
      %51 = dma.hbm_to_vmem [thread:$0]  %s3, 8192, %s46, [#allocation6], 256, 256, 16
    $region17: #{tpu_custom_call.1} parent=1 // pred_fallthru
      _
    // Predicated region
    $region18: #{tpu_custom_call.1} parent=1 // pred_check
      _
    $region19: #{tpu_custom_call.1} parent=1 // pred_check_branch
      %53 = sbr.rel (0) target = $region21
    $region20: #{tpu_custom_call.1} parent=1 // pred_region
      _
    $region21: #{tpu_custom_call.1} parent=1 // pred_fallthru
      _
    // Predicated region
    $region22: #{tpu_custom_call.1} parent=1 // pred_check
      _
    $region23: #{tpu_custom_call.1} parent=1 // pred_check_branch
      %55 = sbr.rel (0) target = $region25
    $region24: #{tpu_custom_call.1} parent=1 // pred_region
      %s57 = ssub.s32 4096, 4096
      %58 = vsyncadd [#allocation9], %s57
      %s59 = sshll.u32 [#allocation8], 4
      %s60 = int_to_ptr.vmem [resolvable:$true] %s59
      %65 = dma.hbm_to_vmem [thread:$0]  %s5, 4096, %s60, [#allocation9], 128, 128, 8
    $region25: #{tpu_custom_call.1} parent=1 // pred_fallthru
      _
    // Predicated region
    $region26: #{tpu_custom_call.1} parent=1 // pred_check
      _
    $region27: #{tpu_custom_call.1} parent=1 // pred_check_branch
      %67 = sbr.rel (0) target = $region29
    $region28: #{tpu_custom_call.1} parent=1 // pred_region
      _
    $region29: #{tpu_custom_call.1} parent=1 // pred_fallthru
      _
    // Predicated region
    $region30: #{tpu_custom_call.1} parent=1 // pred_check
      _
    $region31: #{tpu_custom_call.1} parent=1 // pred_check_branch
      %69 = sbr.rel (0) target = $region33
    $region32: #{tpu_custom_call.1} parent=1 // pred_region
      %70 = dma.done [#allocation3], 128
    $region33: #{tpu_custom_call.1} parent=1 // pred_fallthru
      _
    // Predicated region
    $region34: #{tpu_custom_call.1} parent=1 // pred_check
      _
    $region35: #{tpu_custom_call.1} parent=1 // pred_check_branch
      %72 = sbr.rel (0) target = $region37
    $region36: #{tpu_custom_call.1} parent=1 // pred_region
      %73 = dma.done [#allocation6], 4096
    $region37: #{tpu_custom_call.1} parent=1 // pred_fallthru
      _
    // Predicated region
    $region38: #{tpu_custom_call.1} parent=1 // pred_check
      _
    $region39: #{tpu_custom_call.1} parent=1 // pred_check_branch
      %75 = sbr.rel (0) target = $region41
    $region40: #{tpu_custom_call.1} parent=1 // pred_region
      %76 = dma.done [#allocation6], 8192
    $region41: #{tpu_custom_call.1} parent=1 // pred_fallthru
      _
    // Predicated region
    $region42: #{tpu_custom_call.1} parent=1 // pred_check
      _
    $region43: #{tpu_custom_call.1} parent=1 // pred_check_branch
      %78 = sbr.rel (0) target = $region45
    $region44: #{tpu_custom_call.1} parent=1 // pred_region
      %79 = dma.done [#allocation9], 4096
    $region45: #{tpu_custom_call.1} parent=1 // pred_fallthru
      _
    %v80 = vld [vmem:[#allocation5] sm:$0xff]
    %v81 = vld [vmem:[#allocation5 + $0x8] sm:$0xff]
    %v82 = vld [vmem:[#allocation5 + $0x10] sm:$0xff]
    %v83 = vld [vmem:[#allocation5 + $0x18] sm:$0xff]
    %v84 = vld [vmem:[#allocation5 + $0x20] sm:$0xff]
    %v85 = vld [vmem:[#allocation5 + $0x28] sm:$0xff]
    %v86 = vld [vmem:[#allocation5 + $0x30] sm:$0xff]
    %v87 = vld [vmem:[#allocation5 + $0x38] sm:$0xff]
    %v88 = vld [vmem:[#allocation5 + $0x40] sm:$0xff]
    %v89 = vld [vmem:[#allocation5 + $0x48] sm:$0xff]
    %v90 = vld [vmem:[#allocation5 + $0x50] sm:$0xff]
    %v91 = vld [vmem:[#allocation5 + $0x58] sm:$0xff]
    %v92 = vld [vmem:[#allocation5 + $0x60] sm:$0xff]
    %v93 = vld [vmem:[#allocation5 + $0x68] sm:$0xff]
    %v94 = vld [vmem:[#allocation5 + $0x70] sm:$0xff]
    %v95 = vld [vmem:[#allocation5 + $0x78] sm:$0xff]
    %v96 = vld [vmem:[#allocation5 + $0x80] sm:$0xff]
    %v97 = vld [vmem:[#allocation5 + $0x88] sm:$0xff]
    %v98 = vld [vmem:[#allocation5 + $0x90] sm:$0xff]
    %v99 = vld [vmem:[#allocation5 + $0x98] sm:$0xff]
    %v100 = vld [vmem:[#allocation5 + $0xa0] sm:$0xff]
    %v101 = vld [vmem:[#allocation5 + $0xa8] sm:$0xff]
    %v102 = vld [vmem:[#allocation5 + $0xb0] sm:$0xff]
    %v103 = vld [vmem:[#allocation5 + $0xb8] sm:$0xff]
    %v104 = vld [vmem:[#allocation5 + $0xc0] sm:$0xff]
    %v105 = vld [vmem:[#allocation5 + $0xc8] sm:$0xff]
    %v106 = vld [vmem:[#allocation5 + $0xd0] sm:$0xff]
    %v107 = vld [vmem:[#allocation5 + $0xd8] sm:$0xff]
    %v108 = vld [vmem:[#allocation5 + $0xe0] sm:$0xff]
    %v109 = vld [vmem:[#allocation5 + $0xe8] sm:$0xff]
    %v110 = vld [vmem:[#allocation5 + $0xf0] sm:$0xff]
    %v111 = vld [vmem:[#allocation5 + $0xf8] sm:$0xff]
    %v112 = vld [vmem:[%s2] sm:$0x3]
    %v113 = vld [vmem:[#allocation7] sm:$0xff]
    %v114 = vld [vmem:[#allocation7 + $0x8] sm:$0xff]
    %v115 = vld [vmem:[#allocation7 + $0x10] sm:$0xff]
    %v116 = vld [vmem:[#allocation7 + $0x18] sm:$0xff]
    %v117 = vld [vmem:[#allocation7 + $0x20] sm:$0xff]
    %v118 = vld [vmem:[#allocation7 + $0x28] sm:$0xff]
    %v119 = vld [vmem:[#allocation7 + $0x30] sm:$0xff]
    %v120 = vld [vmem:[#allocation7 + $0x38] sm:$0xff]
    %v121 = vld [vmem:[#allocation7 + $0x40] sm:$0xff]
    %v122 = vld [vmem:[#allocation7 + $0x48] sm:$0xff]
    %v123 = vld [vmem:[#allocation7 + $0x50] sm:$0xff]
    %v124 = vld [vmem:[#allocation7 + $0x58] sm:$0xff]
    %v125 = vld [vmem:[#allocation7 + $0x60] sm:$0xff]
    %v126 = vld [vmem:[#allocation7 + $0x68] sm:$0xff]
    %v127 = vld [vmem:[#allocation7 + $0x70] sm:$0xff]
    %v128 = vld [vmem:[#allocation7 + $0x78] sm:$0xff]
    %v129 = vld [vmem:[#allocation7 + $0x80] sm:$0xff]
    %v130 = vld [vmem:[#allocation7 + $0x88] sm:$0xff]
    %v131 = vld [vmem:[#allocation7 + $0x90] sm:$0xff]
    %v132 = vld [vmem:[#allocation7 + $0x98] sm:$0xff]
    %v133 = vld [vmem:[#allocation7 + $0xa0] sm:$0xff]
    %v134 = vld [vmem:[#allocation7 + $0xa8] sm:$0xff]
    %v135 = vld [vmem:[#allocation7 + $0xb0] sm:$0xff]
    %v136 = vld [vmem:[#allocation7 + $0xb8] sm:$0xff]
    %v137 = vld [vmem:[#allocation7 + $0xc0] sm:$0xff]
    %v138 = vld [vmem:[#allocation7 + $0xc8] sm:$0xff]
    %v139 = vld [vmem:[#allocation7 + $0xd0] sm:$0xff]
    %v140 = vld [vmem:[#allocation7 + $0xd8] sm:$0xff]
    %v141 = vld [vmem:[#allocation7 + $0xe0] sm:$0xff]
    %v142 = vld [vmem:[#allocation7 + $0xe8] sm:$0xff]
    %v143 = vld [vmem:[#allocation7 + $0xf0] sm:$0xff]
    %v144 = vld [vmem:[#allocation7 + $0xf8] sm:$0xff]
    %v145 = vld [vmem:[#allocation7 + $0x100] sm:$0xff]
    %v146 = vld [vmem:[#allocation7 + $0x108] sm:$0xff]
    %v147 = vld [vmem:[#allocation7 + $0x110] sm:$0xff]
    %v148 = vld [vmem:[#allocation7 + $0x118] sm:$0xff]
    %v149 = vld [vmem:[#allocation7 + $0x120] sm:$0xff]
    %v150 = vld [vmem:[#allocation7 + $0x128] sm:$0xff]
    %v151 = vld [vmem:[#allocation7 + $0x130] sm:$0xff]
    %v152 = vld [vmem:[#allocation7 + $0x138] sm:$0xff]
    %v153 = vld [vmem:[#allocation7 + $0x140] sm:$0xff]
    %v154 = vld [vmem:[#allocation7 + $0x148] sm:$0xff]
    %v155 = vld [vmem:[#allocation7 + $0x150] sm:$0xff]
    %v156 = vld [vmem:[#allocation7 + $0x158] sm:$0xff]
    %v157 = vld [vmem:[#allocation7 + $0x160] sm:$0xff]
    %v158 = vld [vmem:[#allocation7 + $0x168] sm:$0xff]
    %v159 = vld [vmem:[#allocation7 + $0x170] sm:$0xff]
    %v160 = vld [vmem:[#allocation7 + $0x178] sm:$0xff]
    %v161 = vld [vmem:[#allocation7 + $0x180] sm:$0xff]
    %v162 = vld [vmem:[#allocation7 + $0x188] sm:$0xff]
    %v163 = vld [vmem:[#allocation7 + $0x190] sm:$0xff]
    %v164 = vld [vmem:[#allocation7 + $0x198] sm:$0xff]
    %v165 = vld [vmem:[#allocation7 + $0x1a0] sm:$0xff]
    %v166 = vld [vmem:[#allocation7 + $0x1a8] sm:$0xff]
    %v167 = vld [vmem:[#allocation7 + $0x1b0] sm:$0xff]
    %v168 = vld [vmem:[#allocation7 + $0x1b8] sm:$0xff]
    %v169 = vld [vmem:[#allocation7 + $0x1c0] sm:$0xff]
    %v170 = vld [vmem:[#allocation7 + $0x1c8] sm:$0xff]
    %v171 = vld [vmem:[#allocation7 + $0x1d0] sm:$0xff]
    %v172 = vld [vmem:[#allocation7 + $0x1d8] sm:$0xff]
    %v173 = vld [vmem:[#allocation7 + $0x1e0] sm:$0xff]
    %v174 = vld [vmem:[#allocation7 + $0x1e8] sm:$0xff]
    %v175 = vld [vmem:[#allocation7 + $0x1f0] sm:$0xff]
    %v176 = vld [vmem:[#allocation7 + $0x1f8] sm:$0xff]
    %v177 = vld [vmem:[%s4] sm:$0x3]
    %v178 = vld [vmem:[#allocation8] sm:$0xff]
    %v179 = vld [vmem:[#allocation8 + $0x8] sm:$0xff]
    %v180 = vld [vmem:[#allocation8 + $0x10] sm:$0xff]
    %v181 = vld [vmem:[#allocation8 + $0x18] sm:$0xff]
    %v182 = vld [vmem:[#allocation8 + $0x20] sm:$0xff]
    %v183 = vld [vmem:[#allocation8 + $0x28] sm:$0xff]
    %v184 = vld [vmem:[#allocation8 + $0x30] sm:$0xff]
    %v185 = vld [vmem:[#allocation8 + $0x38] sm:$0xff]
    %v186 = vld [vmem:[#allocation8 + $0x40] sm:$0xff]
    %v187 = vld [vmem:[#allocation8 + $0x48] sm:$0xff]
    %v188 = vld [vmem:[#allocation8 + $0x50] sm:$0xff]
    %v189 = vld [vmem:[#allocation8 + $0x58] sm:$0xff]
    %v190 = vld [vmem:[#allocation8 + $0x60] sm:$0xff]
    %v191 = vld [vmem:[#allocation8 + $0x68] sm:$0xff]
    %v192 = vld [vmem:[#allocation8 + $0x70] sm:$0xff]
    %v193 = vld [vmem:[#allocation8 + $0x78] sm:$0xff]
    %v194 = vld [vmem:[#allocation8 + $0x80] sm:$0xff]
    %v195 = vld [vmem:[#allocation8 + $0x88] sm:$0xff]
    %v196 = vld [vmem:[#allocation8 + $0x90] sm:$0xff]
    %v197 = vld [vmem:[#allocation8 + $0x98] sm:$0xff]
    %v198 = vld [vmem:[#allocation8 + $0xa0] sm:$0xff]
    %v199 = vld [vmem:[#allocation8 + $0xa8] sm:$0xff]
    %v200 = vld [vmem:[#allocation8 + $0xb0] sm:$0xff]
    %v201 = vld [vmem:[#allocation8 + $0xb8] sm:$0xff]
    %v202 = vld [vmem:[#allocation8 + $0xc0] sm:$0xff]
    %v203 = vld [vmem:[#allocation8 + $0xc8] sm:$0xff]
    %v204 = vld [vmem:[#allocation8 + $0xd0] sm:$0xff]
    %v205 = vld [vmem:[#allocation8 + $0xd8] sm:$0xff]
    %v206 = vld [vmem:[#allocation8 + $0xe0] sm:$0xff]
    %v207 = vld [vmem:[#allocation8 + $0xe8] sm:$0xff]
    %v208 = vld [vmem:[#allocation8 + $0xf0] sm:$0xff]
    %v209 = vld [vmem:[#allocation8 + $0xf8] sm:$0xff]
    %v210 = vld [vmem:[%s6] sm:$0x1]
    %v211 = vld [vmem:[#allocation2] sm:$0xff]
    %v213 = vlaneseq
    %v214 = vshrl.u32 %v213, 7
    %v215 = vsub.s32 0, %v214
    %v216 = vrot.slane %v112, %v215
    %v217 = vlaneseq
    %v218 = vshrl.u32 %v217, 7
    %v219 = vsub.s32 1, %v218
    %v220 = vrot.slane %v112, %v219
    %223 = vmatprep.subr.mxu0 %v111
    %224 = vmatpush1.msra.mxu0 %v110
    %225 = vmatprep.subr.mxu0 %v109
    %226 = vmatpush1.msra.mxu0 %v108
    %227 = vmatprep.subr.mxu0 %v107
    %228 = vmatpush1.msra.mxu0 %v106
    %229 = vmatprep.subr.mxu0 %v105
    %230 = vmatpush1.msra.mxu0 %v104
    %231 = vmatprep.subr.mxu0 %v103
    %232 = vmatpush1.msra.mxu0 %v102
    %233 = vmatprep.subr.mxu0 %v101
    %234 = vmatpush1.msra.mxu0 %v100
    %235 = vmatprep.subr.mxu0 %v99
    %236 = vmatpush1.msra.mxu0 %v98
    %237 = vmatprep.subr.mxu0 %v97
    %238 = vmatpush1.msra.mxu0 %v96
    %239 = vmatprep.subr.mxu0 %v95
    %240 = vmatpush1.msra.mxu0 %v94
    %241 = vmatprep.subr.mxu0 %v93
    %242 = vmatpush1.msra.mxu0 %v92
    %243 = vmatprep.subr.mxu0 %v91
    %244 = vmatpush1.msra.mxu0 %v90
    %245 = vmatprep.subr.mxu0 %v89
    %246 = vmatpush1.msra.mxu0 %v88
    %247 = vmatprep.subr.mxu0 %v87
    %248 = vmatpush1.msra.mxu0 %v86
    %249 = vmatprep.subr.mxu0 %v85
    %250 = vmatpush1.msra.mxu0 %v84
    %251 = vmatprep.subr.mxu0 %v83
    %252 = vmatpush1.msra.mxu0 %v82
    %253 = vmatprep.subr.mxu0 %v81
    %254 = vmatpush1.msra.mxu0 %v80
    %255 = vmatprep.subr.mxu0 0.0
    %256 = vmatpush2.msra.mxu0 0.0
    %257 = vmatprep.subr.mxu0 0.0
    %258 = vmatpush2.msra.mxu0 0.0
    %259 = vmatprep.subr.mxu0 0.0
    %260 = vmatpush2.msra.mxu0 0.0
    %261 = vmatprep.subr.mxu0 0.0
    %262 = vmatpush2.msra.mxu0 0.0
    %263 = vmatprep.subr.mxu0 0.0
    %264 = vmatpush2.msra.mxu0 0.0
    %265 = vmatprep.subr.mxu0 0.0
    %266 = vmatpush2.msra.mxu0 0.0
    %267 = vmatprep.subr.mxu0 0.0
    %268 = vmatpush2.msra.mxu0 0.0
    %269 = vmatprep.subr.mxu0 0.0
    %270 = vmatpush2.msra.mxu0 0.0
    %271 = vmatprep.subr.mxu0 0.0
    %272 = vmatpush2.msra.mxu0 0.0
    %273 = vmatprep.subr.mxu0 0.0
    %274 = vmatpush2.msra.mxu0 0.0
    %275 = vmatprep.subr.mxu0 0.0
    %276 = vmatpush2.msra.mxu0 0.0
    %277 = vmatprep.subr.mxu0 0.0
    %278 = vmatpush2.msra.mxu0 0.0
    %279 = vmatprep.subr.mxu0 0.0
    %280 = vmatpush2.msra.mxu0 0.0
    %281 = vmatprep.subr.mxu0 0.0
    %282 = vmatpush2.msra.mxu0 0.0
    %283 = vmatprep.subr.mxu0 0.0
    %284 = vmatpush2.msra.mxu0 0.0
    %285 = vmatprep.subr.mxu0 0.0
    %286 = vmatpush2.msra.mxu0 0.0
    %287 = vmatprep.mubr.f32.mxu0 0.0
    %288 = vmatmul.mubr.f32.gmra.mxu0 %v211
    %v289 = vpop.f32.mrf.mxu0
    %v290 = vadd.f32 %v216, %v289
    %v291 = vpop.f32.mrf.mxu0
    %v292 = vadd.f32 %v220, %v291
    %293 = vdwg.mxu0
    %v294 = vmax.f32 %v290, 0.0
    %v295 = vmax.f32 %v292, 0.0
    %v297 = vlaneseq
    %v298 = vshrl.u32 %v297, 7
    %v299 = vsub.s32 0, %v298
    %v300 = vrot.slane %v177, %v299
    %v301 = vlaneseq
    %v302 = vshrl.u32 %v301, 7
    %v303 = vsub.s32 1, %v302
    %v304 = vrot.slane %v177, %v303
    %307 = vmatprep.subr.mxu0 %v144
    %308 = vmatpush1.msra.mxu0 %v143
    %309 = vmatprep.subr.mxu0 %v142
    %310 = vmatpush1.msra.mxu0 %v141
    %311 = vmatprep.subr.mxu0 %v140
    %312 = vmatpush1.msra.mxu0 %v139
    %313 = vmatprep.subr.mxu0 %v138
    %314 = vmatpush1.msra.mxu0 %v137
    %315 = vmatprep.subr.mxu0 %v136
    %316 = vmatpush1.msra.mxu0 %v135
    %317 = vmatprep.subr.mxu0 %v134
    %318 = vmatpush1.msra.mxu0 %v133
    %319 = vmatprep.subr.mxu0 %v132
    %320 = vmatpush1.msra.mxu0 %v131
    %321 = vmatprep.subr.mxu0 %v130
    %322 = vmatpush1.msra.mxu0 %v129
    %323 = vmatprep.subr.mxu0 %v128
    %324 = vmatpush1.msra.mxu0 %v127
    %325 = vmatprep.subr.mxu0 %v126
    %326 = vmatpush1.msra.mxu0 %v125
    %327 = vmatprep.subr.mxu0 %v124
    %328 = vmatpush1.msra.mxu0 %v123
    %329 = vmatprep.subr.mxu0 %v122
    %330 = vmatpush1.msra.mxu0 %v121
    %331 = vmatprep.subr.mxu0 %v120
    %332 = vmatpush1.msra.mxu0 %v119
    %333 = vmatprep.subr.mxu0 %v118
    %334 = vmatpush1.msra.mxu0 %v117
    %335 = vmatprep.subr.mxu0 %v116
    %336 = vmatpush1.msra.mxu0 %v115
    %337 = vmatprep.subr.mxu0 %v114
    %338 = vmatpush1.msra.mxu0 %v113
    %339 = vmatprep.subr.mxu0 %v176
    %340 = vmatpush2.msra.mxu0 %v175
    %341 = vmatprep.subr.mxu0 %v174
    %342 = vmatpush2.msra.mxu0 %v173
    %343 = vmatprep.subr.mxu0 %v172
    %344 = vmatpush2.msra.mxu0 %v171
    %345 = vmatprep.subr.mxu0 %v170
    %346 = vmatpush2.msra.mxu0 %v169
    %347 = vmatprep.subr.mxu0 %v168
    %348 = vmatpush2.msra.mxu0 %v167
    %349 = vmatprep.subr.mxu0 %v166
    %350 = vmatpush2.msra.mxu0 %v165
    %351 = vmatprep.subr.mxu0 %v164
    %352 = vmatpush2.msra.mxu0 %v163
    %353 = vmatprep.subr.mxu0 %v162
    %354 = vmatpush2.msra.mxu0 %v161
    %355 = vmatprep.subr.mxu0 %v160
    %356 = vmatpush2.msra.mxu0 %v159
    %357 = vmatprep.subr.mxu0 %v158
    %358 = vmatpush2.msra.mxu0 %v157
    %359 = vmatprep.subr.mxu0 %v156
    %360 = vmatpush2.msra.mxu0 %v155
    %361 = vmatprep.subr.mxu0 %v154
    %362 = vmatpush2.msra.mxu0 %v153
    %363 = vmatprep.subr.mxu0 %v152
    %364 = vmatpush2.msra.mxu0 %v151
    %365 = vmatprep.subr.mxu0 %v150
    %366 = vmatpush2.msra.mxu0 %v149
    %367 = vmatprep.subr.mxu0 %v148
    %368 = vmatpush2.msra.mxu0 %v147
    %369 = vmatprep.subr.mxu0 %v146
    %370 = vmatpush2.msra.mxu0 %v145
    %371 = vmatprep.mubr.f32.mxu0 %v295
    %372 = vmatmul.mubr.f32.gmra.mxu0 %v294
    %v373 = vpop.f32.mrf.mxu0
    %v374 = vadd.f32 %v300, %v373
    %v375 = vpop.f32.mrf.mxu0
    %v376 = vadd.f32 %v304, %v375
    %377 = vdwg.mxu0
    %v378 = vmax.f32 %v374, 0.0
    %v379 = vmax.f32 %v376, 0.0
    %v381 = vlaneseq
    %v382 = vshrl.u32 %v381, 7
    %v383 = vsub.s32 0, %v382
    %v384 = vrot.slane %v210, %v383
    %386 = vmatprep.subr.mxu0 0.0
    %387 = vmatpush1.msra.mxu0 %v193
    %388 = vmatprep.subr.mxu0 0.0
    %389 = vmatpush1.msra.mxu0 %v192
    %390 = vmatprep.subr.mxu0 0.0
    %391 = vmatpush1.msra.mxu0 %v191
    %392 = vmatprep.subr.mxu0 0.0
    %393 = vmatpush1.msra.mxu0 %v190
    %394 = vmatprep.subr.mxu0 0.0
    %395 = vmatpush1.msra.mxu0 %v189
    %396 = vmatprep.subr.mxu0 0.0
    %397 = vmatpush1.msra.mxu0 %v188
    %398 = vmatprep.subr.mxu0 0.0
    %399 = vmatpush1.msra.mxu0 %v187
    %400 = vmatprep.subr.mxu0 0.0
    %401 = vmatpush1.msra.mxu0 %v186
    %402 = vmatprep.subr.mxu0 0.0
    %403 = vmatpush1.msra.mxu0 %v185
    %404 = vmatprep.subr.mxu0 0.0
    %405 = vmatpush1.msra.mxu0 %v184
    %406 = vmatprep.subr.mxu0 0.0
    %407 = vmatpush1.msra.mxu0 %v183
    %408 = vmatprep.subr.mxu0 0.0
    %409 = vmatpush1.msra.mxu0 %v182
    %410 = vmatprep.subr.mxu0 0.0
    %411 = vmatpush1.msra.mxu0 %v181
    %412 = vmatprep.subr.mxu0 0.0
    %413 = vmatpush1.msra.mxu0 %v180
    %414 = vmatprep.subr.mxu0 0.0
    %415 = vmatpush1.msra.mxu0 %v179
    %416 = vmatprep.subr.mxu0 0.0
    %417 = vmatpush1.msra.mxu0 %v178
    %418 = vmatprep.subr.mxu0 0.0
    %419 = vmatpush2.msra.mxu0 %v209
    %420 = vmatprep.subr.mxu0 0.0
    %421 = vmatpush2.msra.mxu0 %v208
    %422 = vmatprep.subr.mxu0 0.0
    %423 = vmatpush2.msra.mxu0 %v207
    %424 = vmatprep.subr.mxu0 0.0
    %425 = vmatpush2.msra.mxu0 %v206
    %426 = vmatprep.subr.mxu0 0.0
    %427 = vmatpush2.msra.mxu0 %v205
    %428 = vmatprep.subr.mxu0 0.0
    %429 = vmatpush2.msra.mxu0 %v204
    %430 = vmatprep.subr.mxu0 0.0
    %431 = vmatpush2.msra.mxu0 %v203
    %432 = vmatprep.subr.mxu0 0.0
    %433 = vmatpush2.msra.mxu0 %v202
    %434 = vmatprep.subr.mxu0 0.0
    %435 = vmatpush2.msra.mxu0 %v201
    %436 = vmatprep.subr.mxu0 0.0
    %437 = vmatpush2.msra.mxu0 %v200
    %438 = vmatprep.subr.mxu0 0.0
    %439 = vmatpush2.msra.mxu0 %v199
    %440 = vmatprep.subr.mxu0 0.0
    %441 = vmatpush2.msra.mxu0 %v198
    %442 = vmatprep.subr.mxu0 0.0
    %443 = vmatpush2.msra.mxu0 %v197
    %444 = vmatprep.subr.mxu0 0.0
    %445 = vmatpush2.msra.mxu0 %v196
    %446 = vmatprep.subr.mxu0 0.0
    %447 = vmatpush2.msra.mxu0 %v195
    %448 = vmatprep.subr.mxu0 0.0
    %449 = vmatpush2.msra.mxu0 %v194
    %450 = vmatprep.mubr.f32.mxu0 %v379
    %451 = vmatmul.mubr.f32.gmra.mxu0 %v378
    %v452 = vpop.f32.mrf.mxu0
    %v453 = vadd.f32 %v384, %v452
    %v454 = vpop.f32.mrf.mxu0
    %455 = vdwg.mxu0
    %456 = vst [vmem:[#allocation10] sm:$0xff] %v453
    // Predicated region
    $region46: #{tpu_custom_call.1} parent=1 // pred_check
      _
    $region47: #{tpu_custom_call.1} parent=1 // pred_check_branch
      %458 = sbr.rel (0) target = $region49
    $region48: #{tpu_custom_call.1} parent=1 // pred_region
      %s460 = ssub.s32 128, 128
      %461 = vsyncadd [#allocation4], %s460
      %s463 = sshll.u32 [#allocation10], 4
      %s464 = int_to_ptr.vmem [resolvable:$true] %s463
      %466 = dma.vmem_to_hbm [thread:$0]  %s464, 128, %s7, [#allocation4]
    $region49: #{tpu_custom_call.1} parent=1 // pred_fallthru
      _
    // Predicated region
    $region50: #{tpu_custom_call.1} parent=1 // pred_check
      _
    $region51: #{tpu_custom_call.1} parent=1 // pred_check_branch
      %468 = sbr.rel (0) target = $region53
    $region52: #{tpu_custom_call.1} parent=1 // pred_region
      %469 = dma.done [#allocation4], 128
    $region53: #{tpu_custom_call.1} parent=1 // pred_fallthru
      _
    %470 = vsyncpa [#allocation3], 1
    %471 = vsyncpa [#allocation6], 1
    %472 = vsyncpa [#allocation9], 1
    %473 = vsyncpa [#allocation4], 1

</llo_original>
